<compile_context>
chip_gen: v7x
topology: tpu7x:2x2x1
jax: 0.10.0
libtpu: 0.0.40
codegen_flags: <defaults>
</compile_context>

<pallas_src>
import functools

import jax
import jax.numpy as jnp
from jax import lax
from jax.experimental import pallas as pl
from jax.experimental.pallas import tpu as pltpu


# ---------------- generation detection (dtype + core count) -----------------
def _device_kind():
    try:
        return jax.devices()[0].device_kind.lower()
    except Exception:
        return ""


_KIND = _device_kind()
# v6e / v7x: bf16-capable VPU/EUP and native bf16 MXU -> bf16 compute path.
# v5e (and older/unknown): keep f32 (no bf16 VPU/EUP; converts would just add work).
_COMPUTE_DTYPE = jnp.bfloat16 if ("v6" in _KIND or "v7" in _KIND) else jnp.float32
# v7x exposes 2 TensorCores per chip; grid is sharded via "parallel" semantics.
_NUM_CORES = 2 if "v7" in _KIND else 1


# ---------------------------- tiling heuristics ------------------------------
def _pick_tiles(n, *, num_cores=1, tm_cap=4096, chunk_cap=256):
    """Pick (tm, chunk, n_pad).

    `chunk` = lanes processed per inner-loop step (keeps (64, chunk) f32 at
    <=16 vregs).  `tm` = lanes per grid step (multiple of `chunk`, capped so
    the x tile stays small).  Grid count (= n_pad // tm) is rounded up to a
    multiple of `num_cores` so v7x's two TensorCores stay balanced; single-core
    chips keep the minimum step count (no forced extra grid steps)."""
    lanes = max(128, pl.cdiv(n, 128) * 128)          # lane-padded batch
    chunk = min(chunk_cap, lanes)
    total_chunks = pl.cdiv(lanes, chunk)
    chunks_per_tile_cap = max(1, tm_cap // chunk)
    steps = pl.cdiv(total_chunks, chunks_per_tile_cap)
    if num_cores > 1:
        steps = pl.cdiv(max(steps, num_cores), num_cores) * num_cores
    tm = pl.cdiv(total_chunks, steps) * chunk        # multiple of chunk
    n_pad = steps * tm                               # grid = steps exactly
    return tm, chunk, n_pad


# ------------------------------- kernel --------------------------------------
def _make_kernel(chunk, n_chunks, compute_dtype):
    cdt = compute_dtype

    def kernel(x_ref,                  # (8,  tm)  f32, batch on lanes, K padded 3->8
               w1_ref, b1_ref,         # (64, 8), (64, 1)
               w2_ref, b2_ref,         # (32, 64), (32, 1)
               w3_ref, b3_ref,         # (16, 32), (16, 1)
               w4_ref, b4_ref,         # (16, 1),  (1, 1)   (w4 stored transposed)
               o_ref):                 # (1,  tm)  f32 lane-dense output slab
        # Weights are tiny: load/cast once per grid step, hoisted out of the loop.
        w1 = w1_ref[...].astype(cdt)
        b1 = b1_ref[...].astype(cdt)
        w2 = w2_ref[...].astype(cdt)
        b2 = b2_ref[...].astype(cdt)
        w3 = w3_ref[...].astype(cdt)
        b3 = b3_ref[...].astype(cdt)
        w4 = w4_ref[...]               # layer 4 stays f32 (mul + reduce + sigmoid)
        b4 = b4_ref[...]

        def body(c, carry):
            start = pl.multiple_of(c * chunk, chunk)
            xc = x_ref[:, pl.ds(start, chunk)].astype(cdt)            # (8, chunk)

            # Layer 1: Linear(3->64) on the MXU (contraction padded to 8).
            h1 = jnp.dot(w1, xc, preferred_element_type=jnp.float32)
            h1 = jnp.maximum(h1.astype(cdt) + b1, 0)                  # (64, chunk)

            # Layer 2: Linear(64->32) on the MXU.
            h2 = jnp.dot(w2, h1, preferred_element_type=jnp.float32)
            h2 = jnp.maximum(h2.astype(cdt) + b2, 0)                  # (32, chunk)

            # Layer 3: Linear(32->16) on the MXU.
            h3 = jnp.dot(w3, h2, preferred_element_type=jnp.float32)
            h3 = jnp.maximum(h3.astype(cdt) + b3, 0)                  # (16, chunk)

            # Layer 4: out dim 1 -> VPU mul + sublane reduce (XLU) + sigmoid (EUP).
            z = jnp.sum(w4 * h3.astype(jnp.float32), axis=0, keepdims=True) + b4
            o_ref[:, pl.ds(start, chunk)] = jax.nn.sigmoid(z).astype(o_ref.dtype)
            return carry

        # Short fixed trip-count: fully unrolled for LLO scheduler visibility,
        # chunk-local intermediates die each iteration (no vreg spill).
        lax.fori_loop(0, n_chunks, body, 0, unroll=True)

    return kernel


# ------------------------------- wrapper --------------------------------------
def pack_params(params):
    """Pre-pack PyTorch-layout params [(w (out,in), b (out,)), ...] once,
    outside the hot path: f32, w1 contraction-padded 3->8, biases as columns,
    w4 stored transposed as a (16, 1) column."""
    (w1, b1), (w2, b2), (w3, b3), (w4, b4) = params
    f32 = jnp.float32
    w1 = jnp.asarray(w1, f32)
    return (
        jnp.pad(w1, ((0, 0), (0, 8 - w1.shape[1]))),          # (64, 8)
        jnp.asarray(b1, f32).reshape(-1, 1),                   # (64, 1)
        jnp.asarray(w2, f32),                                  # (32, 64)
        jnp.asarray(b2, f32).reshape(-1, 1),                   # (32, 1)
        jnp.asarray(w3, f32),                                  # (16, 32)
        jnp.asarray(b3, f32).reshape(-1, 1),                   # (16, 1)
        jnp.asarray(w4, f32).reshape(-1, 1),                   # (16, 1)
        jnp.asarray(b4, f32).reshape(1, 1),                    # (1, 1)
    )


def _forward_impl(x, kp):
    N, K = x.shape
    tm, chunk, n_pad = _pick_tiles(N, num_cores=_NUM_CORES)

    # Batch-on-lanes slab: transpose to (3, N), pad contraction dim to 8 and
    # lanes to the tile multiple.  Fuses into one op under jit.
    xt = jnp.pad(x.astype(jnp.float32).T, ((0, 8 - K), (0, n_pad - N)))

    def full_spec(arr):
        nd = arr.ndim
        return pl.BlockSpec(arr.shape, lambda i, _nd=nd: (0,) * _nd)

    out = pl.pallas_call(
        _make_kernel(chunk, tm // chunk, _COMPUTE_DTYPE),
        out_shape=jax.ShapeDtypeStruct((1, n_pad), jnp.float32),
        grid_spec=pltpu.PrefetchScalarGridSpec(
            num_scalar_prefetch=0,
            grid=(n_pad // tm,),
            in_specs=[pl.BlockSpec((8, tm), lambda i: (0, i))]    # x^T tile
                     + [full_spec(p) for p in kp],                # resident params
            out_specs=pl.BlockSpec((1, tm), lambda i: (0, i)),    # lane-dense out
        ),
        compiler_params=pltpu.CompilerParams(
            dimension_semantics=("parallel",)),
    )(xt, *kp)

    return out[0, :N].reshape(N, 1)


# Whole forward (pad/transpose + kernel + slice/reshape) under one jit:
# no extra XLA dispatches or HBM round-trips on the host side.
discriminator_forward = jax.jit(_forward_impl)


def init_params(key):
    """Deterministic init mirroring nn.Linear exactly: w (out,in), b (out,)."""
    dims = [(3, 64), (64, 32), (32, 16), (16, 1)]
    params = []
    for idx, (fan_in, fan_out) in enumerate(dims):
        kw, kb, key = jax.random.split(jax.random.fold_in(key, idx), 3)
        bound = 1.0 / jnp.sqrt(fan_in)
        w = jax.random.uniform(kw, (fan_out, fan_in), jnp.float32, -bound, bound)
        b = jax.random.uniform(kb, (fan_out,), jnp.float32, -bound, bound)
        params.append((w, b))
    return params


if __name__ == "__main__":
    key = jax.random.PRNGKey(0)
    kx, kparam = jax.random.split(key)

    params = init_params(kparam)
    packed = pack_params(params)              # pre-packed once, outside hot path

    tol = 3e-2 if _COMPUTE_DTYPE == jnp.bfloat16 else 5e-3

    # N=8: tiny batch (single tile); N=515: exercises lane padding + multi-chunk
    # inner loop.  Both checked against a plain-JAX eval-mode reference.
    for n in (8, 515):
        x = jax.random.normal(jax.random.fold_in(kx, n), (n, 3), jnp.float32)
        out = jax.block_until_ready(discriminator_forward(x, packed))

        ref = x
        for i, (w, b) in enumerate(params):
            ref = ref @ w.T + b
            ref = jnp.maximum(ref, 0.0) if i < 3 else jax.nn.sigmoid(ref)

        assert out.shape == (n, 1)
        err = float(jnp.max(jnp.abs(out - ref)))
        assert jnp.allclose(out, ref, atol=tol, rtol=tol), \
            f"mismatch at n={n}: max abs err {err:.3e}"

    print("KERNEL_OK")
</pallas_src>

<mosaic_0001>
module attributes {stable_mosaic.version = 11 : i64} {
  func.func @kernel(%arg0: i32, %arg1: memref<8x128xf32, #tpu.memory_space<vmem>>, %arg2: memref<64x8xf32, #tpu.memory_space<vmem>>, %arg3: memref<64x1xf32, #tpu.memory_space<vmem>>, %arg4: memref<32x64xf32, #tpu.memory_space<vmem>>, %arg5: memref<32x1xf32, #tpu.memory_space<vmem>>, %arg6: memref<16x32xf32, #tpu.memory_space<vmem>>, %arg7: memref<16x1xf32, #tpu.memory_space<vmem>>, %arg8: memref<16x1xf32, #tpu.memory_space<vmem>>, %arg9: memref<1x1xf32, #tpu.memory_space<vmem>>, %arg10: memref<1x128xf32, #tpu.memory_space<vmem>>) attributes {dimension_semantics = [#tpu.dimension_semantics<parallel>], iteration_bounds = array<i64: 1>, scalar_prefetch = 0 : i64, scratch_operands = 0 : i64, tpu.core_type = #tpu.core_type<tc>, window_params = [{transform_indices = @transform_0, window_bounds = array<i64: 8, 128>}, {pipeline_mode = #tpu.pipeline_mode<synchronous>, transform_indices = @transform_1, window_bounds = array<i64: 64, 8>}, {pipeline_mode = #tpu.pipeline_mode<synchronous>, transform_indices = @transform_2, window_bounds = array<i64: 64, 1>}, {pipeline_mode = #tpu.pipeline_mode<synchronous>, transform_indices = @transform_3, window_bounds = array<i64: 32, 64>}, {pipeline_mode = #tpu.pipeline_mode<synchronous>, transform_indices = @transform_4, window_bounds = array<i64: 32, 1>}, {pipeline_mode = #tpu.pipeline_mode<synchronous>, transform_indices = @transform_5, window_bounds = array<i64: 16, 32>}, {pipeline_mode = #tpu.pipeline_mode<synchronous>, transform_indices = @transform_6, window_bounds = array<i64: 16, 1>}, {pipeline_mode = #tpu.pipeline_mode<synchronous>, transform_indices = @transform_7, window_bounds = array<i64: 16, 1>}, {pipeline_mode = #tpu.pipeline_mode<synchronous>, transform_indices = @transform_8, window_bounds = array<i64: 1, 1>}, {transform_indices = @transform_9, window_bounds = array<i64: 1, 128>}]} {
    %c0 = arith.constant 0 : index
    %c0_0 = arith.constant 0 : index
    %0 = vector.load %arg2[%c0, %c0_0] : memref<64x8xf32, #tpu.memory_space<vmem>>, vector<64x8xf32>
    %c0_1 = arith.constant 0 : index
    %c0_2 = arith.constant 0 : index
    %1 = vector.load %arg3[%c0_1, %c0_2] : memref<64x1xf32, #tpu.memory_space<vmem>>, vector<64x1xf32>
    %c0_3 = arith.constant 0 : index
    %c0_4 = arith.constant 0 : index
    %2 = vector.load %arg4[%c0_3, %c0_4] : memref<32x64xf32, #tpu.memory_space<vmem>>, vector<32x64xf32>
    %c0_5 = arith.constant 0 : index
    %c0_6 = arith.constant 0 : index
    %3 = vector.load %arg5[%c0_5, %c0_6] : memref<32x1xf32, #tpu.memory_space<vmem>>, vector<32x1xf32>
    %c0_7 = arith.constant 0 : index
    %c0_8 = arith.constant 0 : index
    %4 = vector.load %arg6[%c0_7, %c0_8] : memref<16x32xf32, #tpu.memory_space<vmem>>, vector<16x32xf32>
    %c0_9 = arith.constant 0 : index
    %c0_10 = arith.constant 0 : index
    %5 = vector.load %arg7[%c0_9, %c0_10] : memref<16x1xf32, #tpu.memory_space<vmem>>, vector<16x1xf32>
    %c0_11 = arith.constant 0 : index
    %c0_12 = arith.constant 0 : index
    %6 = vector.load %arg8[%c0_11, %c0_12] : memref<16x1xf32, #tpu.memory_space<vmem>>, vector<16x1xf32>
    %c0_13 = arith.constant 0 : index
    %c0_14 = arith.constant 0 : index
    %7 = vector.load %arg9[%c0_13, %c0_14] : memref<1x1xf32, #tpu.memory_space<vmem>>, vector<1x1xf32>
    %c0_i32 = arith.constant 0 : i32
    %c128_i32 = arith.constant 128 : i32
    %8 = arith.muli %c0_i32, %c128_i32 : i32
    %9 = tpu.assume_multiple %8, 128 : i32
    %c0_15 = arith.constant 0 : index
    %10 = arith.index_cast %9 : i32 to index
    %11 = vector.load %arg1[%c0_15, %10] : memref<8x128xf32, #tpu.memory_space<vmem>>, vector<8x128xf32>
    %cst = arith.constant dense<0.000000e+00> : vector<64x128xf32>
    %12 = tpu.matmul %0, %11, %cst {dimension_numbers = #tpu.dot_dimension_numbers<[1], [0], [0], [1], [0, 0, 1, 1], [], []>} : vector<64x8xf32>, vector<8x128xf32>, vector<64x128xf32> -> vector<64x128xf32>
    %13 = vector.broadcast %1 : vector<64x1xf32> to vector<64x128xf32>
    %14 = arith.addf %12, %13 : vector<64x128xf32>
    %cst_16 = arith.constant 0.000000e+00 : f32
    %15 = vector.broadcast %cst_16 : f32 to vector<64x128xf32>
    %16 = arith.maximumf %14, %15 : vector<64x128xf32>
    %cst_17 = arith.constant dense<0.000000e+00> : vector<32x128xf32>
    %17 = tpu.matmul %2, %16, %cst_17 {dimension_numbers = #tpu.dot_dimension_numbers<[1], [0], [0], [1], [0, 0, 1, 1], [], []>} : vector<32x64xf32>, vector<64x128xf32>, vector<32x128xf32> -> vector<32x128xf32>
    %18 = vector.broadcast %3 : vector<32x1xf32> to vector<32x128xf32>
    %19 = arith.addf %17, %18 : vector<32x128xf32>
    %cst_18 = arith.constant 0.000000e+00 : f32
    %20 = vector.broadcast %cst_18 : f32 to vector<32x128xf32>
    %21 = arith.maximumf %19, %20 : vector<32x128xf32>
    %cst_19 = arith.constant dense<0.000000e+00> : vector<16x128xf32>
    %22 = tpu.matmul %4, %21, %cst_19 {dimension_numbers = #tpu.dot_dimension_numbers<[1], [0], [0], [1], [0, 0, 1, 1], [], []>} : vector<16x32xf32>, vector<32x128xf32>, vector<16x128xf32> -> vector<16x128xf32>
    %23 = vector.broadcast %5 : vector<16x1xf32> to vector<16x128xf32>
    %24 = arith.addf %22, %23 : vector<16x128xf32>
    %cst_20 = arith.constant 0.000000e+00 : f32
    %25 = vector.broadcast %cst_20 : f32 to vector<16x128xf32>
    %26 = arith.maximumf %24, %25 : vector<16x128xf32>
    %27 = vector.broadcast %6 : vector<16x1xf32> to vector<16x128xf32>
    %28 = arith.mulf %27, %26 : vector<16x128xf32>
    %cst_21 = arith.constant dense<0.000000e+00> : vector<128xf32>
    %29 = vector.multi_reduction <add>, %28, %cst_21 [0] : vector<16x128xf32> to vector<128xf32>
    %30 = vector.shape_cast %29 : vector<128xf32> to vector<1x128xf32>
    %31 = vector.broadcast %7 : vector<1x1xf32> to vector<1x128xf32>
    %32 = arith.addf %30, %31 : vector<1x128xf32>
    %33 = arith.negf %32 : vector<1x128xf32>
    %34 = math.exp %33 : vector<1x128xf32>
    %cst_22 = arith.constant 1.000000e+00 : f32
    %35 = vector.broadcast %cst_22 : f32 to vector<1x128xf32>
    %36 = arith.addf %35, %34 : vector<1x128xf32>
    %37 = arith.divf %35, %36 : vector<1x128xf32>
    %c0_23 = arith.constant 0 : index
    %38 = arith.index_cast %9 : i32 to index
    %39 = vector.load %arg10[%c0_23, %38] : memref<1x128xf32, #tpu.memory_space<vmem>>, vector<1x128xf32>
    tpu.vector_store %arg10[%c0_23, %38], %37 {strides = array<i32>} : memref<1x128xf32, #tpu.memory_space<vmem>>, vector<1x128xf32>,
    %c1_i32 = arith.constant 1 : i32
    return
  }
  func.func @transform_0(%arg0: i32) -> (i32, i32) {
    %c0_i32 = arith.constant 0 : i32
    %c0_i32_0 = arith.constant 0 : i32
    return %c0_i32, %arg0 : i32, i32
  }
  func.func @transform_1(%arg0: i32) -> (i32, i32) {
    %c0_i32 = arith.constant 0 : i32
    %c0_i32_0 = arith.constant 0 : i32
    %c0_i32_1 = arith.constant 0 : i32
    return %c0_i32, %c0_i32_0 : i32, i32
  }
  func.func @transform_2(%arg0: i32) -> (i32, i32) {
    %c0_i32 = arith.constant 0 : i32
    %c0_i32_0 = arith.constant 0 : i32
    %c0_i32_1 = arith.constant 0 : i32
    return %c0_i32, %c0_i32_0 : i32, i32
  }
  func.func @transform_3(%arg0: i32) -> (i32, i32) {
    %c0_i32 = arith.constant 0 : i32
    %c0_i32_0 = arith.constant 0 : i32
    %c0_i32_1 = arith.constant 0 : i32
    return %c0_i32, %c0_i32_0 : i32, i32
  }
  func.func @transform_4(%arg0: i32) -> (i32, i32) {
    %c0_i32 = arith.constant 0 : i32
    %c0_i32_0 = arith.constant 0 : i32
    %c0_i32_1 = arith.constant 0 : i32
    return %c0_i32, %c0_i32_0 : i32, i32
  }
  func.func @transform_5(%arg0: i32) -> (i32, i32) {
    %c0_i32 = arith.constant 0 : i32
    %c0_i32_0 = arith.constant 0 : i32
    %c0_i32_1 = arith.constant 0 : i32
    return %c0_i32, %c0_i32_0 : i32, i32
  }
  func.func @transform_6(%arg0: i32) -> (i32, i32) {
    %c0_i32 = arith.constant 0 : i32
    %c0_i32_0 = arith.constant 0 : i32
    %c0_i32_1 = arith.constant 0 : i32
    return %c0_i32, %c0_i32_0 : i32, i32
  }
  func.func @transform_7(%arg0: i32) -> (i32, i32) {
    %c0_i32 = arith.constant 0 : i32
    %c0_i32_0 = arith.constant 0 : i32
    %c0_i32_1 = arith.constant 0 : i32
    return %c0_i32, %c0_i32_0 : i32, i32
  }
  func.func @transform_8(%arg0: i32) -> (i32, i32) {
    %c0_i32 = arith.constant 0 : i32
    %c0_i32_0 = arith.constant 0 : i32
    %c0_i32_1 = arith.constant 0 : i32
    return %c0_i32, %c0_i32_0 : i32, i32
  }
  func.func @transform_9(%arg0: i32) -> (i32, i32) {
    %c0_i32 = arith.constant 0 : i32
    %c0_i32_0 = arith.constant 0 : i32
    return %c0_i32, %arg0 : i32, i32
  }
}

</mosaic_0001>

<llo_original>
// kernel: _forward_impl.1
$region0: #{_forward_impl.1}
  #allocation0 [shape = 'u32[]', space=smem, size = 0x4, offset = 0x4, fixed_abs, tag = 'smem constant byte address 0x4 - core index']
  #allocation1 [shape = 'u32[144,128]{1,0:T(1,128)}', space=vmem, size = 0x12000, scoped, tag = 'internal scratch']
  #allocation2 [shape = 'f32[1,1]{1,0:T(1,128)S(1)}', space=vmem, size = 0x200, scoped, tag = 'scoped memory for _forward_impl.1']
  %s0 = inlined_call_operand.vmem [shape: f32[8,128], index: 0, kind: input, shape index: {}]
  %s1 = inlined_call_operand.vmem [shape: f32[64,8], index: 1, kind: input, shape index: {}]
  %s2 = inlined_call_operand.vmem [shape: f32[64,1], index: 2, kind: input, shape index: {}]
  %s3 = inlined_call_operand.vmem [shape: f32[32,64], index: 3, kind: input, shape index: {}]
  %s4 = inlined_call_operand.vmem [shape: f32[32,1], index: 4, kind: input, shape index: {}]
  %s5 = inlined_call_operand.vmem [shape: f32[16,32], index: 5, kind: input, shape index: {}]
  %s6 = inlined_call_operand.vmem [shape: f32[16,1], index: 6, kind: input, shape index: {}]
  %s7 = inlined_call_operand.vmem [shape: f32[16,1], index: 7, kind: input, shape index: {}]
  %s8 = inlined_call_operand.<no memory space> [shape: f32[1,1], index: 8, kind: input, shape index: {}]
  %s9 = inlined_call_operand.vmem [shape: f32[1,128], index: 9, kind: output, shape index: {}]
  %s10 = sld [smem:[#allocation0]]
  $region46: #{_forward_impl.1} parent=0
    _
  %s12 = ssub.s32 1, %s10
  %s13 = scalar_select 0, %s12, %s10
  %v14 = vstv %s8
  %15 = vst [vmem:[#allocation2] sm:$0x1] %v14
  // Predicated region
  $region2: #{_forward_impl.1} parent=0 // pred_check
    _
  $region3: #{_forward_impl.1} parent=0 // pred_check_branch
    %17 = sbr.rel (0) target = $region5
  $region4: #{_forward_impl.1} parent=0 // pred_region
    _
  $region5: #{_forward_impl.1} parent=0 // pred_fallthru
    _
  // Predicated region
  $region6: #{_forward_impl.1} parent=0 // pred_check
    _
  $region7: #{_forward_impl.1} parent=0 // pred_check_branch
    %19 = sbr.rel (0) target = $region9
  $region8: #{_forward_impl.1} parent=0 // pred_region
    _
  $region9: #{_forward_impl.1} parent=0 // pred_fallthru
    _
  // Predicated region
  $region10: #{_forward_impl.1} parent=0 // pred_check
    _
  $region11: #{_forward_impl.1} parent=0 // pred_check_branch
    %21 = sbr.rel (0) target = $region13
  $region12: #{_forward_impl.1} parent=0 // pred_region
    _
  $region13: #{_forward_impl.1} parent=0 // pred_fallthru
    _
  // Predicated region
  $region14: #{_forward_impl.1} parent=0 // pred_check
    _
  $region15: #{_forward_impl.1} parent=0 // pred_check_branch
    %23 = sbr.rel (0) target = $region17
  $region16: #{_forward_impl.1} parent=0 // pred_region
    _
  $region17: #{_forward_impl.1} parent=0 // pred_fallthru
    _
  // Predicated region
  $region18: #{_forward_impl.1} parent=0 // pred_check
    _
  $region19: #{_forward_impl.1} parent=0 // pred_check_branch
    %25 = sbr.rel (0) target = $region21
  $region20: #{_forward_impl.1} parent=0 // pred_region
    _
  $region21: #{_forward_impl.1} parent=0 // pred_fallthru
    _
  // Predicated region
  $region22: #{_forward_impl.1} parent=0 // pred_check
    _
  $region23: #{_forward_impl.1} parent=0 // pred_check_branch
    %27 = sbr.rel (0) target = $region25
  $region24: #{_forward_impl.1} parent=0 // pred_region
    _
  $region25: #{_forward_impl.1} parent=0 // pred_fallthru
    _
  // Predicated region
  $region26: #{_forward_impl.1} parent=0 // pred_check
    _
  $region27: #{_forward_impl.1} parent=0 // pred_check_branch
    %29 = sbr.rel (0) target = $region29
  $region28: #{_forward_impl.1} parent=0 // pred_region
    _
  $region29: #{_forward_impl.1} parent=0 // pred_fallthru
    _
  // Predicated region
  $region30: #{_forward_impl.1} parent=0 // pred_check
    _
  $region31: #{_forward_impl.1} parent=0 // pred_check_branch
    %31 = sbr.rel (0) target = $region33
  $region32: #{_forward_impl.1} parent=0 // pred_region
    _
  $region33: #{_forward_impl.1} parent=0 // pred_fallthru
    _
  // Predicated region
  $region34: #{_forward_impl.1} parent=0 // pred_check
    _
  $region35: #{_forward_impl.1} parent=0 // pred_check_branch
    %33 = sbr.rel (0) target = $region37
  $region36: #{_forward_impl.1} parent=0 // pred_region
    _
  $region37: #{_forward_impl.1} parent=0 // pred_fallthru
    _
  %v34 = vld [vmem:[%s1] sm:$0xff]
  %v35 = vld [vmem:[%s1 + $0x8] sm:$0xff]
  %v36 = vld [vmem:[%s1 + $0x10] sm:$0xff]
  %v37 = vld [vmem:[%s1 + $0x18] sm:$0xff]
  %v38 = vld [vmem:[%s1 + $0x20] sm:$0xff]
  %v39 = vld [vmem:[%s1 + $0x28] sm:$0xff]
  %v40 = vld [vmem:[%s1 + $0x30] sm:$0xff]
  %v41 = vld [vmem:[%s1 + $0x38] sm:$0xff]
  %v42 = vld [vmem:[%s2] sm:$0xff]
  %v43 = vld [vmem:[%s2 + $0x8] sm:$0xff]
  %v44 = vld [vmem:[%s2 + $0x10] sm:$0xff]
  %v45 = vld [vmem:[%s2 + $0x18] sm:$0xff]
  %v46 = vld [vmem:[%s2 + $0x20] sm:$0xff]
  %v47 = vld [vmem:[%s2 + $0x28] sm:$0xff]
  %v48 = vld [vmem:[%s2 + $0x30] sm:$0xff]
  %v49 = vld [vmem:[%s2 + $0x38] sm:$0xff]
  %v50 = vld [vmem:[%s3] sm:$0xff]
  %v51 = vld [vmem:[%s3 + $0x8] sm:$0xff]
  %v52 = vld [vmem:[%s3 + $0x10] sm:$0xff]
  %v53 = vld [vmem:[%s3 + $0x18] sm:$0xff]
  %v54 = vld [vmem:[%s4] sm:$0xff]
  %v55 = vld [vmem:[%s4 + $0x8] sm:$0xff]
  %v56 = vld [vmem:[%s4 + $0x10] sm:$0xff]
  %v57 = vld [vmem:[%s4 + $0x18] sm:$0xff]
  %v58 = vld [vmem:[%s5] sm:$0xff]
  %v59 = vld [vmem:[%s5 + $0x8] sm:$0xff]
  %v60 = vld [vmem:[%s6] sm:$0xff]
  %v61 = vld [vmem:[%s6 + $0x8] sm:$0xff]
  %v62 = vld [vmem:[%s7] sm:$0xff]
  %v63 = vld [vmem:[%s7 + $0x8] sm:$0xff]
  %v64 = vld [vmem:[#allocation2] sm:$0x1]
  %v65 = vld [vmem:[%s0] sm:$0xff]
  %67 = vset.pattern.permute.xlu0 0
  %68 = vperm.xlu0 %67, %v42
  %v69 = vpop.permute.xlu0 %68
  %72 = vset.pattern.permute.xlu0 0
  %73 = vperm.xlu0 %72, %v43
  %v74 = vpop.permute.xlu0 %73
  %77 = vset.pattern.permute.xlu0 0
  %78 = vperm.xlu0 %77, %v44
  %v79 = vpop.permute.xlu0 %78
  %82 = vset.pattern.permute.xlu0 0
  %83 = vperm.xlu0 %82, %v45
  %v84 = vpop.permute.xlu0 %83
  %87 = vset.pattern.permute.xlu0 0
  %88 = vperm.xlu0 %87, %v46
  %v89 = vpop.permute.xlu0 %88
  %92 = vset.pattern.permute.xlu0 0
  %93 = vperm.xlu0 %92, %v47
  %v94 = vpop.permute.xlu0 %93
  %97 = vset.pattern.permute.xlu0 0
  %98 = vperm.xlu0 %97, %v48
  %v99 = vpop.permute.xlu0 %98
  %102 = vset.pattern.permute.xlu0 0
  %103 = vperm.xlu0 %102, %v49
  %v104 = vpop.permute.xlu0 %103
  %vm106 = vcmask 64512
  %v108 = vsel %vm106, %v34, 0
  %v111 = vsel %vm106, %v35, 0
  %v114 = vsel %vm106, %v36, 0
  %v117 = vsel %vm106, %v37, 0
  %v120 = vsel %vm106, %v38, 0
  %v123 = vsel %vm106, %v39, 0
  %v126 = vsel %vm106, %v40, 0
  %v129 = vsel %vm106, %v41, 0
  %131 = vmatprep.subr.mxu0 0.0
  %132 = vmatpush1.msra.mxu0 %v65
  %133 = vmatprep.subr.mxu0 0.0
  %134 = vmatpush1.msra.mxu0 0.0
  %135 = vmatprep.subr.mxu0 0.0
  %136 = vmatpush1.msra.mxu0 0.0
  %137 = vmatprep.subr.mxu0 0.0
  %138 = vmatpush1.msra.mxu0 0.0
  %139 = vmatprep.subr.mxu0 0.0
  %140 = vmatpush1.msra.mxu0 0.0
  %141 = vmatprep.subr.mxu0 0.0
  %142 = vmatpush1.msra.mxu0 0.0
  %143 = vmatprep.subr.mxu0 0.0
  %144 = vmatpush1.msra.mxu0 0.0
  %145 = vmatprep.subr.mxu0 0.0
  %146 = vmatpush1.msra.mxu0 0.0
  %147 = vmatprep.subr.mxu0 0.0
  %148 = vmatpush1.msra.mxu0 0.0
  %149 = vmatprep.subr.mxu0 0.0
  %150 = vmatpush1.msra.mxu0 0.0
  %151 = vmatprep.subr.mxu0 0.0
  %152 = vmatpush1.msra.mxu0 0.0
  %153 = vmatprep.subr.mxu0 0.0
  %154 = vmatpush1.msra.mxu0 0.0
  %155 = vmatprep.subr.mxu0 0.0
  %156 = vmatpush1.msra.mxu0 0.0
  %157 = vmatprep.subr.mxu0 0.0
  %158 = vmatpush1.msra.mxu0 0.0
  %159 = vmatprep.subr.mxu0 0.0
  %160 = vmatpush1.msra.mxu0 0.0
  %161 = vmatprep.subr.mxu0 0.0
  %162 = vmatpush1.msra.mxu0 0.0
  %163 = vmatprep.subr.mxu0 0.0
  %164 = vmatpush1.msra.mxu0 0.0
  %165 = vmatprep.subr.mxu0 0.0
  %166 = vmatpush1.msra.mxu0 0.0
  %167 = vmatprep.subr.mxu0 0.0
  %168 = vmatpush1.msra.mxu0 0.0
  %169 = vmatprep.subr.mxu0 0.0
  %170 = vmatpush1.msra.mxu0 0.0
  %171 = vmatprep.subr.mxu0 0.0
  %172 = vmatpush1.msra.mxu0 0.0
  %173 = vmatprep.subr.mxu0 0.0
  %174 = vmatpush1.msra.mxu0 0.0
  %175 = vmatprep.subr.mxu0 0.0
  %176 = vmatpush1.msra.mxu0 0.0
  %177 = vmatprep.subr.mxu0 0.0
  %178 = vmatpush1.msra.mxu0 0.0
  %179 = vmatprep.subr.mxu0 0.0
  %180 = vmatpush1.msra.mxu0 0.0
  %181 = vmatprep.subr.mxu0 0.0
  %182 = vmatpush1.msra.mxu0 0.0
  %183 = vmatprep.subr.mxu0 0.0
  %184 = vmatpush1.msra.mxu0 0.0
  %185 = vmatprep.subr.mxu0 0.0
  %186 = vmatpush1.msra.mxu0 0.0
  %187 = vmatprep.subr.mxu0 0.0
  %188 = vmatpush1.msra.mxu0 0.0
  %189 = vmatprep.subr.mxu0 0.0
  %190 = vmatpush1.msra.mxu0 0.0
  %191 = vmatprep.subr.mxu0 0.0
  %192 = vmatpush1.msra.mxu0 0.0
  %193 = vmatprep.subr.mxu0 0.0
  %194 = vmatpush1.msra.mxu0 0.0
  %195 = vmatprep.mubr.f32.mxu0 0.0
  %196 = vmatmul.mubr.f32.gmra.mrb[0].mxu0 %v108
  %v197 = vpop.f32.mrb[0].mxu0
  %v198 = vadd.f32 %v69, %v197
  %v199 = vpop.f32.mrb[0].mxu0
  %200 = vmatprep.mubr.f32.mxu0 0.0
  %201 = vmatmul.mubr.f32.gmra.mrb[0].mxu0 %v111
  %v202 = vpop.f32.mrb[0].mxu0
  %v203 = vadd.f32 %v74, %v202
  %v204 = vpop.f32.mrb[0].mxu0
  %205 = vmatprep.mubr.f32.mxu0 0.0
  %206 = vmatmul.mubr.f32.gmra.mrb[0].mxu0 %v114
  %v207 = vpop.f32.mrb[0].mxu0
  %v208 = vadd.f32 %v79, %v207
  %v209 = vpop.f32.mrb[0].mxu0
  %210 = vmatprep.mubr.f32.mxu0 0.0
  %211 = vmatmul.mubr.f32.gmra.mrb[0].mxu0 %v117
  %v212 = vpop.f32.mrb[0].mxu0
  %v213 = vadd.f32 %v84, %v212
  %v214 = vpop.f32.mrb[0].mxu0
  %215 = vmatprep.mubr.f32.mxu0 0.0
  %216 = vmatmul.mubr.f32.gmra.mrb[0].mxu0 %v120
  %v217 = vpop.f32.mrb[0].mxu0
  %v218 = vadd.f32 %v89, %v217
  %v219 = vpop.f32.mrb[0].mxu0
  %220 = vmatprep.mubr.f32.mxu0 0.0
  %221 = vmatmul.mubr.f32.gmra.mrb[0].mxu0 %v123
  %v222 = vpop.f32.mrb[0].mxu0
  %v223 = vadd.f32 %v94, %v222
  %v224 = vpop.f32.mrb[0].mxu0
  %225 = vmatprep.mubr.f32.mxu0 0.0
  %226 = vmatmul.mubr.f32.gmra.mrb[0].mxu0 %v126
  %v227 = vpop.f32.mrb[0].mxu0
  %v228 = vadd.f32 %v99, %v227
  %v229 = vpop.f32.mrb[0].mxu0
  %230 = vmatprep.mubr.f32.mxu0 0.0
  %231 = vmatmul.mubr.f32.gmra.mrb[0].mxu0 %v129
  %v232 = vpop.f32.mrb[0].mxu0
  %v233 = vadd.f32 %v104, %v232
  %v234 = vpop.f32.mrb[0].mxu0
  %235 = vdwg.mxu0
  %v236 = vmax.f32 %v198, 0.0
  %v237 = vmax.f32 %v203, 0.0
  %v238 = vmax.f32 %v208, 0.0
  %v239 = vmax.f32 %v213, 0.0
  %v240 = vmax.f32 %v218, 0.0
  %v241 = vmax.f32 %v223, 0.0
  %v242 = vmax.f32 %v228, 0.0
  %v243 = vmax.f32 %v233, 0.0
  %245 = vset.pattern.permute.xlu0 0
  %246 = vperm.xlu0 %245, %v54
  %v247 = vpop.permute.xlu0 %246
  %250 = vset.pattern.permute.xlu0 0
  %251 = vperm.xlu0 %250, %v55
  %v252 = vpop.permute.xlu0 %251
  %255 = vset.pattern.permute.xlu0 0
  %256 = vperm.xlu0 %255, %v56
  %v257 = vpop.permute.xlu0 %256
  %260 = vset.pattern.permute.xlu0 0
  %261 = vperm.xlu0 %260, %v57
  %v262 = vpop.permute.xlu0 %261
  %vm264 = vcmask 523264
  %v266 = vsel %vm264, %v50, 0
  %v269 = vsel %vm264, %v51, 0
  %v272 = vsel %vm264, %v52, 0
  %v275 = vsel %vm264, %v53, 0
  %277 = vmatprep.subr.mxu0 0.0
  %278 = vmatpush1.msra.mxu0 %v236
  %279 = vmatprep.subr.mxu0 0.0
  %280 = vmatpush1.msra.mxu0 %v237
  %281 = vmatprep.subr.mxu0 0.0
  %282 = vmatpush1.msra.mxu0 %v238
  %283 = vmatprep.subr.mxu0 0.0
  %284 = vmatpush1.msra.mxu0 %v239
  %285 = vmatprep.subr.mxu0 0.0
  %286 = vmatpush1.msra.mxu0 %v240
  %287 = vmatprep.subr.mxu0 0.0
  %288 = vmatpush1.msra.mxu0 %v241
  %289 = vmatprep.subr.mxu0 0.0
  %290 = vmatpush1.msra.mxu0 %v242
  %291 = vmatprep.subr.mxu0 0.0
  %292 = vmatpush1.msra.mxu0 %v243
  %293 = vmatprep.subr.mxu0 0.0
  %294 = vmatpush1.msra.mxu0 0.0
  %295 = vmatprep.subr.mxu0 0.0
  %296 = vmatpush1.msra.mxu0 0.0
  %297 = vmatprep.subr.mxu0 0.0
  %298 = vmatpush1.msra.mxu0 0.0
  %299 = vmatprep.subr.mxu0 0.0
  %300 = vmatpush1.msra.mxu0 0.0
  %301 = vmatprep.subr.mxu0 0.0
  %302 = vmatpush1.msra.mxu0 0.0
  %303 = vmatprep.subr.mxu0 0.0
  %304 = vmatpush1.msra.mxu0 0.0
  %305 = vmatprep.subr.mxu0 0.0
  %306 = vmatpush1.msra.mxu0 0.0
  %307 = vmatprep.subr.mxu0 0.0
  %308 = vmatpush1.msra.mxu0 0.0
  %309 = vmatprep.subr.mxu0 0.0
  %310 = vmatpush1.msra.mxu0 0.0
  %311 = vmatprep.subr.mxu0 0.0
  %312 = vmatpush1.msra.mxu0 0.0
  %313 = vmatprep.subr.mxu0 0.0
  %314 = vmatpush1.msra.mxu0 0.0
  %315 = vmatprep.subr.mxu0 0.0
  %316 = vmatpush1.msra.mxu0 0.0
  %317 = vmatprep.subr.mxu0 0.0
  %318 = vmatpush1.msra.mxu0 0.0
  %319 = vmatprep.subr.mxu0 0.0
  %320 = vmatpush1.msra.mxu0 0.0
  %321 = vmatprep.subr.mxu0 0.0
  %322 = vmatpush1.msra.mxu0 0.0
  %323 = vmatprep.subr.mxu0 0.0
  %324 = vmatpush1.msra.mxu0 0.0
  %325 = vmatprep.subr.mxu0 0.0
  %326 = vmatpush1.msra.mxu0 0.0
  %327 = vmatprep.subr.mxu0 0.0
  %328 = vmatpush1.msra.mxu0 0.0
  %329 = vmatprep.subr.mxu0 0.0
  %330 = vmatpush1.msra.mxu0 0.0
  %331 = vmatprep.subr.mxu0 0.0
  %332 = vmatpush1.msra.mxu0 0.0
  %333 = vmatprep.subr.mxu0 0.0
  %334 = vmatpush1.msra.mxu0 0.0
  %335 = vmatprep.subr.mxu0 0.0
  %336 = vmatpush1.msra.mxu0 0.0
  %337 = vmatprep.subr.mxu0 0.0
  %338 = vmatpush1.msra.mxu0 0.0
  %339 = vmatprep.subr.mxu0 0.0
  %340 = vmatpush1.msra.mxu0 0.0
  %341 = vmatprep.mubr.f32.mxu0 0.0
  %342 = vmatmul.mubr.f32.gmra.mrb[0].mxu0 %v266
  %v343 = vpop.f32.mrb[0].mxu0
  %v344 = vadd.f32 %v247, %v343
  %v345 = vpop.f32.mrb[0].mxu0
  %346 = vmatprep.mubr.f32.mxu0 0.0
  %347 = vmatmul.mubr.f32.gmra.mrb[0].mxu0 %v269
  %v348 = vpop.f32.mrb[0].mxu0
  %v349 = vadd.f32 %v252, %v348
  %v350 = vpop.f32.mrb[0].mxu0
  %351 = vmatprep.mubr.f32.mxu0 0.0
  %352 = vmatmul.mubr.f32.gmra.mrb[0].mxu0 %v272
  %v353 = vpop.f32.mrb[0].mxu0
  %v354 = vadd.f32 %v257, %v353
  %v355 = vpop.f32.mrb[0].mxu0
  %356 = vmatprep.mubr.f32.mxu0 0.0
  %357 = vmatmul.mubr.f32.gmra.mrb[0].mxu0 %v275
  %v358 = vpop.f32.mrb[0].mxu0
  %v359 = vadd.f32 %v262, %v358
  %v360 = vpop.f32.mrb[0].mxu0
  %361 = vdwg.mxu0
  %v362 = vmax.f32 %v344, 0.0
  %v363 = vmax.f32 %v349, 0.0
  %v364 = vmax.f32 %v354, 0.0
  %v365 = vmax.f32 %v359, 0.0
  %367 = vset.pattern.permute.xlu0 0
  %368 = vperm.xlu0 %367, %v60
  %v369 = vpop.permute.xlu0 %368
  %372 = vset.pattern.permute.xlu0 0
  %373 = vperm.xlu0 %372, %v61
  %v374 = vpop.permute.xlu0 %373
  %vm376 = vcmask 261120
  %v378 = vsel %vm376, %v58, 0
  %v381 = vsel %vm376, %v59, 0
  %383 = vmatprep.subr.mxu0 0.0
  %384 = vmatpush1.msra.mxu0 %v362
  %385 = vmatprep.subr.mxu0 0.0
  %386 = vmatpush1.msra.mxu0 %v363
  %387 = vmatprep.subr.mxu0 0.0
  %388 = vmatpush1.msra.mxu0 %v364
  %389 = vmatprep.subr.mxu0 0.0
  %390 = vmatpush1.msra.mxu0 %v365
  %391 = vmatprep.subr.mxu0 0.0
  %392 = vmatpush1.msra.mxu0 0.0
  %393 = vmatprep.subr.mxu0 0.0
  %394 = vmatpush1.msra.mxu0 0.0
  %395 = vmatprep.subr.mxu0 0.0
  %396 = vmatpush1.msra.mxu0 0.0
  %397 = vmatprep.subr.mxu0 0.0
  %398 = vmatpush1.msra.mxu0 0.0
  %399 = vmatprep.subr.mxu0 0.0
  %400 = vmatpush1.msra.mxu0 0.0
  %401 = vmatprep.subr.mxu0 0.0
  %402 = vmatpush1.msra.mxu0 0.0
  %403 = vmatprep.subr.mxu0 0.0
  %404 = vmatpush1.msra.mxu0 0.0
  %405 = vmatprep.subr.mxu0 0.0
  %406 = vmatpush1.msra.mxu0 0.0
  %407 = vmatprep.subr.mxu0 0.0
  %408 = vmatpush1.msra.mxu0 0.0
  %409 = vmatprep.subr.mxu0 0.0
  %410 = vmatpush1.msra.mxu0 0.0
  %411 = vmatprep.subr.mxu0 0.0
  %412 = vmatpush1.msra.mxu0 0.0
  %413 = vmatprep.subr.mxu0 0.0
  %414 = vmatpush1.msra.mxu0 0.0
  %415 = vmatprep.subr.mxu0 0.0
  %416 = vmatpush1.msra.mxu0 0.0
  %417 = vmatprep.subr.mxu0 0.0
  %418 = vmatpush1.msra.mxu0 0.0
  %419 = vmatprep.subr.mxu0 0.0
  %420 = vmatpush1.msra.mxu0 0.0
  %421 = vmatprep.subr.mxu0 0.0
  %422 = vmatpush1.msra.mxu0 0.0
  %423 = vmatprep.subr.mxu0 0.0
  %424 = vmatpush1.msra.mxu0 0.0
  %425 = vmatprep.subr.mxu0 0.0
  %426 = vmatpush1.msra.mxu0 0.0
  %427 = vmatprep.subr.mxu0 0.0
  %428 = vmatpush1.msra.mxu0 0.0
  %429 = vmatprep.subr.mxu0 0.0
  %430 = vmatpush1.msra.mxu0 0.0
  %431 = vmatprep.subr.mxu0 0.0
  %432 = vmatpush1.msra.mxu0 0.0
  %433 = vmatprep.subr.mxu0 0.0
  %434 = vmatpush1.msra.mxu0 0.0
  %435 = vmatprep.subr.mxu0 0.0
  %436 = vmatpush1.msra.mxu0 0.0
  %437 = vmatprep.subr.mxu0 0.0
  %438 = vmatpush1.msra.mxu0 0.0
  %439 = vmatprep.subr.mxu0 0.0
  %440 = vmatpush1.msra.mxu0 0.0
  %441 = vmatprep.subr.mxu0 0.0
  %442 = vmatpush1.msra.mxu0 0.0
  %443 = vmatprep.subr.mxu0 0.0
  %444 = vmatpush1.msra.mxu0 0.0
  %445 = vmatprep.subr.mxu0 0.0
  %446 = vmatpush1.msra.mxu0 0.0
  %447 = vmatprep.mubr.f32.mxu0 0.0
  %448 = vmatmul.mubr.f32.gmra.mrb[0].mxu0 %v378
  %v449 = vpop.f32.mrb[0].mxu0
  %v450 = vadd.f32 %v369, %v449
  %v451 = vpop.f32.mrb[0].mxu0
  %452 = vmatprep.mubr.f32.mxu0 0.0
  %453 = vmatmul.mubr.f32.gmra.mrb[0].mxu0 %v381
  %v454 = vpop.f32.mrb[0].mxu0
  %v455 = vadd.f32 %v374, %v454
  %v456 = vpop.f32.mrb[0].mxu0
  %457 = vdwg.mxu0
  %v458 = vmax.f32 %v450, 0.0
  %v459 = vmax.f32 %v455, 0.0
  %461 = vset.pattern.permute.xlu0 0
  %462 = vperm.xlu0 %461, %v62
  %v463 = vpop.permute.xlu0 %462
  %466 = vset.pattern.permute.xlu0 0
  %467 = vperm.xlu0 %466, %v63
  %v468 = vpop.permute.xlu0 %467
  %v470 = vmul.f32 %v463, %v458
  %v471 = vmul.f32 %v468, %v459
  %v472 = vadd.f32 %v470, %v471
  %v473 = vrot.slane %v472, 4
  %v474 = vadd.f32 %v472, %v473
  %v475 = vrot.slane %v474, 2
  %v476 = vadd.f32 %v474, %v475
  %v477 = vrot.slane %v476, 1
  %v478 = vadd.f32 %v476, %v477
  %480 = vset.pattern.permute.xlu0 0
  %481 = vperm.xlu0 %480, %v64
  %v482 = vpop.permute.xlu0 %481
  %v484 = vlaneseq
  %v485 = vshrl.u32 %v484, 7
  %v486 = vsub.s32 0, %v485
  %v487 = vrot.slane %v482, %v486
  %v488 = vadd.f32 %v478, %v487
  %v489 = vxor.u32 %v488, 2147483648
  %v490 = vmul.f32 %v489, 1.442695
  %v491 = vpow.pop %v490
  %v492 = vadd.f32 %v491, 1.0
  %v493 = vrcp.pop %v492
  %v494 = vmul.f32 1.0, %v493
  %495 = vst [vmem:[%s9] sm:$0x1] %v494
  // Predicated region
  $region38: #{_forward_impl.1} parent=0 // pred_check
    _
  $region39: #{_forward_impl.1} parent=0 // pred_check_branch
    %497 = sbr.rel (0) target = $region41
  $region40: #{_forward_impl.1} parent=0 // pred_region
    _
  $region41: #{_forward_impl.1} parent=0 // pred_fallthru
    _
  // Predicated region
  $region42: #{_forward_impl.1} parent=0 // pred_check
    _
  $region43: #{_forward_impl.1} parent=0 // pred_check_branch
    %499 = sbr.rel (0) target = $region45
  $region44: #{_forward_impl.1} parent=0 // pred_region
    _
  $region45: #{_forward_impl.1} parent=0 // pred_fallthru
    _

</llo_original>
